<compile_context>
chip_gen: v6e
topology: v6e:2x2x1
jax: 0.10.0
libtpu: 0.0.40
codegen_flags: <defaults>
</compile_context>

<pallas_src>
from functools import partial

import jax
import jax.numpy as jnp
from jax.experimental import pallas as pl
from jax.experimental.pallas import tpu as pltpu


def _snake_beta_kernel(x_ref, p_ref, o_ref):
    """o = x + c - c*cos(a2*x), with per-row (a2, c) packed in p_ref[:, 0:2]."""
    x = x_ref[...]                 # (TM, TL) f32, lane-dense
    p = p_ref[...]                 # (TM, 2)  f32: [:,0]=2*alpha_eff, [:,1]=0.5/(beta_eff+eps)
    a2 = p[:, 0:1]                 # (TM, 1) -> broadcast over lanes
    c = p[:, 1:2]                  # (TM, 1)
    o_ref[...] = x + c - c * jnp.cos(a2 * x)


def _round_up(v, m):
    return ((v + m - 1) // m) * m


def snake_beta(x, alpha, beta, *, alpha_logscale=True,
               block_bytes=4 << 20, max_lane_tile=4096, max_row_tile=512):
    """SnakeBeta forward.  x: (N, C, L); alpha, beta: (C,)  ->  (N, C, L) float32."""
    N, C, L = x.shape
    M = N * C
    x2 = x.reshape(M, L).astype(jnp.float32)        # free, contiguous view

    # --- precompute per-channel constants once on the tiny (C,) vectors ---------
    a = alpha.astype(jnp.float32)
    b = beta.astype(jnp.float32)
    if alpha_logscale:
        a = jnp.exp(a)
        b = jnp.exp(b)
    a2 = 2.0 * a                                    # sin^2(t) = 0.5*(1 - cos(2t))
    c = 0.5 / (b + 1e-9)
    params = jnp.tile(jnp.stack([a2, c], axis=-1), (N, 1))   # (M, 2): row n*C+c -> channel c

    # --- tile selection ----------------------------------------------------------
    # Lane tile: multiple of 128, capped; row tile: multiple of 8, capped, and the
    # whole block capped at ~block_bytes of f32 so double-buffered in+out stays
    # well under the scoped VMEM limit on every TPU generation.
    TL = min(max_lane_tile, _round_up(L, 128))
    budget_rows = max(8, ((block_bytes // 4) // TL) // 8 * 8)
    TM = min(max_row_tile, _round_up(M, 8), budget_rows)

    # v7x megacore: make sure at least 2 blocks exist along a "parallel" axis.
    if pl.cdiv(M, TM) * pl.cdiv(L, TL) == 1:
        if L > 128 and TL > 128:
            TL = max(128, _round_up(pl.cdiv(TL, 2), 128))
        elif M > 8 and TM > 8:
            TM = max(8, _round_up(pl.cdiv(TM, 2), 8))

    grid = (pl.cdiv(M, TM), pl.cdiv(L, TL))

    out2 = pl.pallas_call(
        _snake_beta_kernel,
        out_shape=jax.ShapeDtypeStruct((M, L), jnp.float32),
        grid=grid,
        in_specs=[
            pl.BlockSpec((TM, TL), lambda i, j: (i, j)),
            pl.BlockSpec((TM, 2), lambda i, j: (i, 0)),
        ],
        out_specs=pl.BlockSpec((TM, TL), lambda i, j: (i, j)),
        compiler_params=pltpu.CompilerParams(
            dimension_semantics=("parallel", "parallel"),
            vmem_limit_bytes=32 << 20),
    )(x2, params)
    return out2.reshape(N, C, L)


# ----------------------------------------------------------------------------
# Pure-JAX reference (verification only)
# ----------------------------------------------------------------------------
def snake_beta_ref(x, alpha, beta, *, alpha_logscale=True):
    a = alpha[None, :, None]
    b = beta[None, :, None]
    if alpha_logscale:
        a = jnp.exp(a)
        b = jnp.exp(b)
    return x + (1.0 / (b + 1e-9)) * jnp.sin(x * a) ** 2


if __name__ == "__main__":
    key = jax.random.PRNGKey(0)
    kx, ka, kb = jax.random.split(key, 3)

    # Small shapes consistent with the module: (batch, channels, time).
    N, C, L = 2, 8, 256
    x = jax.random.normal(kx, (N, C, L), jnp.float32)
    # Module initializes log-scale alpha/beta at zero; small random values exercise
    # the per-channel broadcast non-trivially.
    alpha = 0.3 * jax.random.normal(ka, (C,), jnp.float32)
    beta = 0.3 * jax.random.normal(kb, (C,), jnp.float32)

    out = jax.block_until_ready(snake_beta(x, alpha, beta, alpha_logscale=True))
    ref = jax.block_until_ready(snake_beta_ref(x, alpha, beta, alpha_logscale=True))

    assert out.shape == ref.shape, (out.shape, ref.shape)
    err = float(jnp.max(jnp.abs(out - ref)))
    assert jnp.allclose(out, ref, atol=1e-4, rtol=1e-4), err

    print("KERNEL_OK")
</pallas_src>

<mosaic_0001>
module attributes {stable_mosaic.version = 11 : i64} {
  func.func @_snake_beta_kernel(%arg0: i32, %arg1: i32, %arg2: memref<16x128xf32, #tpu.memory_space<vmem>>, %arg3: memref<16x2xf32, #tpu.memory_space<vmem>>, %arg4: memref<16x128xf32, #tpu.memory_space<vmem>>) attributes {dimension_semantics = [#tpu.dimension_semantics<parallel>, #tpu.dimension_semantics<parallel>], iteration_bounds = array<i64: 1, 2>, scalar_prefetch = 0 : i64, scratch_operands = 0 : i64, tpu.core_type = #tpu.core_type<tc>, window_params = [{transform_indices = @transform_0, window_bounds = array<i64: 16, 128>}, {transform_indices = @transform_1, window_bounds = array<i64: 16, 2>}, {transform_indices = @transform_2, window_bounds = array<i64: 16, 128>}]} {
    %c0 = arith.constant 0 : index
    %c0_0 = arith.constant 0 : index
    %0 = vector.load %arg2[%c0, %c0_0] : memref<16x128xf32, #tpu.memory_space<vmem>>, vector<16x128xf32>
    %c0_1 = arith.constant 0 : index
    %c0_2 = arith.constant 0 : index
    %1 = vector.load %arg3[%c0_1, %c0_2] : memref<16x2xf32, #tpu.memory_space<vmem>>, vector<16x2xf32>
    %2 = vector.extract_strided_slice %1 {offsets = [0, 0], sizes = [16, 1], strides = [1, 1]} : vector<16x2xf32> to vector<16x1xf32>
    %3 = vector.extract_strided_slice %1 {offsets = [0, 1], sizes = [16, 1], strides = [1, 1]} : vector<16x2xf32> to vector<16x1xf32>
    %4 = vector.broadcast %3 : vector<16x1xf32> to vector<16x128xf32>
    %5 = arith.addf %0, %4 : vector<16x128xf32>
    %6 = vector.broadcast %2 : vector<16x1xf32> to vector<16x128xf32>
    %7 = arith.mulf %6, %0 : vector<16x128xf32>
    %8 = math.cos %7 : vector<16x128xf32>
    %9 = vector.broadcast %3 : vector<16x1xf32> to vector<16x128xf32>
    %10 = arith.mulf %9, %8 : vector<16x128xf32>
    %11 = arith.subf %5, %10 : vector<16x128xf32>
    %c0_3 = arith.constant 0 : index
    %c0_4 = arith.constant 0 : index
    %12 = vector.load %arg4[%c0_3, %c0_4] : memref<16x128xf32, #tpu.memory_space<vmem>>, vector<16x128xf32>
    tpu.vector_store %arg4[%c0_3, %c0_4], %11 {strides = array<i32>} : memref<16x128xf32, #tpu.memory_space<vmem>>, vector<16x128xf32>,
    return
  }
  func.func @transform_0(%arg0: i32, %arg1: i32) -> (i32, i32) {
    %c0_i32 = arith.constant 0 : i32
    return %arg0, %arg1 : i32, i32
  }
  func.func @transform_1(%arg0: i32, %arg1: i32) -> (i32, i32) {
    %c0_i32 = arith.constant 0 : i32
    %c0_i32_0 = arith.constant 0 : i32
    return %arg0, %c0_i32 : i32, i32
  }
  func.func @transform_2(%arg0: i32, %arg1: i32) -> (i32, i32) {
    %c0_i32 = arith.constant 0 : i32
    return %arg0, %arg1 : i32, i32
  }
}

</mosaic_0001>

<llo_original>
// kernel: tpu_custom_call.1
$region0: #{tpu_custom_call.1}
  #allocation0 [shape = 'u32[]', space=smem, size = 0x4, offset = 0x4, fixed_abs, tag = 'smem constant byte address 0x4 - core index']
  #allocation1 [shape = 'u32[144,128]{1,0:T(1,128)}', space=vmem, size = 0x12000, scoped, tag = 'internal scratch']
  %s0 = inlined_call_operand.hbm [shape: f32[16,256], index: 0, kind: input, shape index: {}]
  %s1 = inlined_call_operand.vmem [shape: f32[16,2], index: 1, kind: input, shape index: {}]
  %s2 = inlined_call_operand.hbm [shape: f32[16,256], index: 2, kind: output, shape index: {}]
  %s3 = sld [smem:[#allocation0]]
  $region45: #{tpu_custom_call.1} parent=0
    _
  %s5 = ssub.s32 1, %s3
  %s6 = scalar_select 0, %s5, %s3
  $region1: #{tpu_custom_call.1} parent=0
    #allocation2 [shape = 'u8[16384]{0}', space=vmem, size = 0x4000, scoped, tag = 'input window, operand 0']
    #allocation3 [shape = 's32[2]{0}', space=sflag, size = 0x8, scoped, tag = 'scoped memory for tpu_custom_call.1']
    #allocation4 [shape = 's32[2]{0}', space=sflag, size = 0x8, scoped, tag = 'scoped memory for tpu_custom_call.1']
    #allocation5 [shape = 'u8[16384]{0}', space=vmem, size = 0x4000, scoped, tag = 'output window, operand 0']
    %7 = vsyncpa [#allocation3], 0
    %s8 = scalar_lea.sflag [#allocation3], 1
    %9 = vsyncpa %s8, 0
    %10 = vsyncpa [#allocation4], 0
    %s11 = scalar_lea.sflag [#allocation4], 1
    %12 = vsyncpa %s11, 0
    loop: start=0, step=1, limit=4
    $region2: #{tpu_custom_call.1} parent=1 // loop_pre_header
      _
    $region3: #{tpu_custom_call.1} parent=1 // loop_header
      %s14 = sphi 0, %s18
      %p15 = scmp.ge.s32.totalorder %s14, 4
      %s21 = sphi 0, %s33
      %s22 = sphi 0, %s29
      %s23 = sphi 0, %s21
      %s24 = sphi 0, %s22
      %s25 = sphi 0, %s23
      %s26 = sphi 0, %s24
      %s38 = sphi 0, %s40
      %s41 = sphi 0, %s38
      %s42 = sphi 0, %s41
      %s58 = sphi 0, %s42
      %s64 = sphi 0, %s66
      %s67 = sphi 0, %s64
      %s68 = sphi 0, %s67
      %s84 = sphi 0, %s68
      %s92 = sphi 0, %s94
      %s95 = sphi 0, %s92
      %s96 = sphi 0, %s95
      %s112 = sphi 0, %s96
    $region4: #{tpu_custom_call.1} parent=1 // loop_header_branch
      %17 = sbr.rel (%p15) target = $region8
    $region5: #{tpu_custom_call.1} parent=1 // loop_body
      %s19 = ssub.s32 %s14, 1
      %s20 = ssub.s32 %s14, 2
      %s27 = sadd.s32 1, %s22
      %p28 = scmp.ge.s32.totalorder %s27, 2
      %s29 = scalar_select %p28, 0, %s27
      %s30 = sadd.s32 1, %s21
      %s31 = scalar_select %p28, %s30, %s21
      %p32 = scmp.ge.s32.totalorder %s31, 1
      %s33 = scalar_select %p32, 0, %s31
      %s34 = ssub.s32 %s21, %s33
      %s35 = ssub.s32 %s22, %s29
      %s36 = sor.u32 %s34, %s35
      %p37 = scmp.eq.s32.totalorder %s36, 0
      %s39 = sadd.s32 %s38, 1
      %s40 = scalar_select %p37, %s38, %s39
      %p43 = pneg %p37
      %p44 = scmp.eq.s32.totalorder %s14, 1
      %p45 = por %p43, %p44
      %p46 = scmp.ne.s32.totalorder %s38, %s41
      %p47 = scmp.eq.s32.totalorder %s14, 0
      %p48 = por %p46, %p47
      %p49 = scmp.ne.s32.totalorder %s38, %s41
      %p50 = scmp.eq.s32.totalorder %s19, 1
      %p51 = por %p49, %p50
      %p52 = scmp.ne.s32.totalorder %s41, %s42
      %p53 = scmp.eq.s32.totalorder %s19, 0
      %p54 = por %p52, %p53
      %p55 = scmp.ne.s32.totalorder %s41, %s42
      %p56 = scmp.eq.s32.totalorder %s20, 1
      %p57 = por %p55, %p56
      %p59 = scmp.ne.s32.totalorder %s42, %s58
      %p60 = scmp.eq.s32.totalorder %s20, 0
      %p61 = por %p59, %p60
      %s62 = ssub.s32 %s21, %s33
      %p63 = scmp.eq.s32.totalorder %s62, 0
      %s65 = sadd.s32 %s64, 1
      %s66 = scalar_select %p63, %s64, %s65
      %p69 = pneg %p63
      %p70 = scmp.eq.s32.totalorder %s14, 1
      %p71 = por %p69, %p70
      %p72 = scmp.ne.s32.totalorder %s64, %s67
      %p73 = scmp.eq.s32.totalorder %s14, 0
      %p74 = por %p72, %p73
      %p75 = scmp.ne.s32.totalorder %s64, %s67
      %p76 = scmp.eq.s32.totalorder %s19, 1
      %p77 = por %p75, %p76
      %p78 = scmp.ne.s32.totalorder %s67, %s68
      %p79 = scmp.eq.s32.totalorder %s19, 0
      %p80 = por %p78, %p79
      %p81 = scmp.ne.s32.totalorder %s67, %s68
      %p82 = scmp.eq.s32.totalorder %s20, 1
      %p83 = por %p81, %p82
      %p85 = scmp.ne.s32.totalorder %s68, %s84
      %p86 = scmp.eq.s32.totalorder %s20, 0
      %p87 = por %p85, %p86
      %s88 = ssub.s32 %s21, %s33
      %s89 = ssub.s32 %s22, %s29
      %s90 = sor.u32 %s88, %s89
      %p91 = scmp.eq.s32.totalorder %s90, 0
      %s93 = sadd.s32 %s92, 1
      %s94 = scalar_select %p91, %s92, %s93
      %p97 = pneg %p91
      %p98 = scmp.eq.s32.totalorder %s14, 1
      %p99 = por %p97, %p98
      %p100 = scmp.ne.s32.totalorder %s92, %s95
      %p101 = scmp.eq.s32.totalorder %s14, 0
      %p102 = por %p100, %p101
      %p103 = scmp.ne.s32.totalorder %s92, %s95
      %p104 = scmp.eq.s32.totalorder %s19, 1
      %p105 = por %p103, %p104
      %p106 = scmp.ne.s32.totalorder %s95, %s96
      %p107 = scmp.eq.s32.totalorder %s19, 0
      %p108 = por %p106, %p107
      %p109 = scmp.ne.s32.totalorder %s95, %s96
      %p110 = scmp.eq.s32.totalorder %s20, 1
      %p111 = por %p109, %p110
      %p113 = scmp.ne.s32.totalorder %s96, %s112
      %p114 = scmp.eq.s32.totalorder %s20, 0
      %p115 = por %p113, %p114
      %p116 = scmp.le.s32.totalorder 1, %s14
      %p117 = scmp.lt.s32.totalorder %s14, 3
      %p118 = pnand %p116, %p117
      %p119 = pneg %p118
      // Predicated region
      $region9: #{tpu_custom_call.1} parent=5 // pred_check
        _
      $region10: #{tpu_custom_call.1} parent=5 // pred_check_branch
        %121 = sbr.rel (%p118) target = $region12
      $region11: #{tpu_custom_call.1} parent=5 // pred_region
        %s122 = ssub.s32 %s14, 1
        // Predicated region
        $region13: #{tpu_custom_call.1} parent=11 // pred_check
          %p123 = pneg %p80
        $region14: #{tpu_custom_call.1} parent=11 // pred_check_branch
          %125 = sbr.rel (%p123) target = $region16
        $region15: #{tpu_custom_call.1} parent=11 // pred_region
          %s126 = smul.u32 2, %s23
          %p127 = scmp.lt.s32.totalorder %s126, 1
          %s128 = scalar_select %p127, %s126, 1
          %s129 = smul.addr %s128, 8
          %s130 = scalar_lea.vmem %s1, %s129
          %s131 = smul.u32 2, %s23
        $region16: #{tpu_custom_call.1} parent=11 // pred_fallthru
          _
      $region12: #{tpu_custom_call.1} parent=5 // pred_fallthru
        _
      %p132 = scmp.lt.s32.totalorder %s14, 2
      // Predicated region
      $region17: #{tpu_custom_call.1} parent=5 // pred_check
        %p133 = pneg %p132
      $region18: #{tpu_custom_call.1} parent=5 // pred_check_branch
        %135 = sbr.rel (%p133) target = $region20
      $region19: #{tpu_custom_call.1} parent=5 // pred_region
        // Predicated region
        $region21: #{tpu_custom_call.1} parent=19 // pred_check
          %p136 = pneg %p48
        $region22: #{tpu_custom_call.1} parent=19 // pred_check_branch
          %138 = sbr.rel (%p136) target = $region24
        $region23: #{tpu_custom_call.1} parent=19 // pred_region
          %s139 = sand.u32 %s38, 1
          %s140 = scalar_lea.sflag [#allocation3], %s139
          %s141 = sand.u32 %s38, 1
          %s142 = smul.addr %s141, 16
          %s143 = scalar_lea.vmem [#allocation2], %s142
          %s144 = smul.u32 2, %s21
          %s146 = ssub.s32 256, 256
          %147 = vsyncadd %s140, %s146
          %s148 = smul.addr %s144, 2
          %s149 = sadd.s32 %s22, %s148
          %s150 = smul.addr %s149, 128
          %s151 = scalar_lea.hbm %s0, %s150
          %s152 = sshll.u32 %s143, 4
          %s153 = int_to_ptr.vmem [resolvable:$true] %s152
          %158 = dma.hbm_to_vmem [thread:$0]  %s151, 256, %s153, %s140, 256, 128, 8
        $region24: #{tpu_custom_call.1} parent=19 // pred_fallthru
          _
      $region20: #{tpu_custom_call.1} parent=5 // pred_fallthru
        _
      %p159 = scmp.le.s32.totalorder 1, %s14
      %p160 = scmp.lt.s32.totalorder %s14, 3
      %p161 = pnand %p159, %p160
      %p162 = pneg %p161
      // Predicated region
      $region25: #{tpu_custom_call.1} parent=5 // pred_check
        _
      $region26: #{tpu_custom_call.1} parent=5 // pred_check_branch
        %164 = sbr.rel (%p161) target = $region28
      $region27: #{tpu_custom_call.1} parent=5 // pred_region
        %s165 = ssub.s32 %s14, 1
        %s166 = sand.u32 %s41, 1
        %s167 = scalar_lea.sflag [#allocation3], %s166
        %s168 = sand.u32 %s41, 1
        %s169 = smul.addr %s168, 16
        %s170 = scalar_lea.vmem [#allocation2], %s169
        // Predicated region
        $region29: #{tpu_custom_call.1} parent=27 // pred_check
          %p171 = pneg %p54
        $region30: #{tpu_custom_call.1} parent=27 // pred_check_branch
          %173 = sbr.rel (%p171) target = $region32
        $region31: #{tpu_custom_call.1} parent=27 // pred_region
          %174 = dma.done %s167, 256
        $region32: #{tpu_custom_call.1} parent=27 // pred_fallthru
          _
        %s175 = sand.u32 %s41, 1
        %s176 = scalar_lea.sflag [#allocation3], %s175
        %s177 = sand.u32 %s41, 1
        %s178 = smul.addr %s177, 16
        %s179 = scalar_lea.vmem [#allocation2], %s178
        %p180 = pneg %p54
        %p181 = pneg %p51
        %s182 = smul.u32 2, %s23
        %p183 = scmp.lt.s32.totalorder %s182, 1
        %s184 = scalar_select %p183, %s182, 1
        %s185 = smul.addr %s184, 8
        %s186 = scalar_lea.vmem %s1, %s185
        %p187 = pneg %p80
        %p188 = pneg %p77
        %p189 = pneg %p108
        %p190 = pneg %p105
        %s191 = sand.u32 %s95, 1
        %s192 = scalar_lea.sflag [#allocation4], %s191
        %s193 = sand.u32 %s95, 1
        %s194 = smul.addr %s193, 16
        %s195 = scalar_lea.vmem [#allocation5], %s194
        %s196 = smul.u32 2, %s23
        %s197 = smul.u32 2, %s23
        %p198 = scmp.lt.s32.totalorder %s197, 1
        %s199 = scalar_select %p198, %s197, 1
        %s200 = smul.addr %s199, 8
        %s201 = scalar_lea.vmem %s1, %s200
        %s202 = smul.u32 2, %s23
        %s203 = smul.u32 2, %s23
        %v204 = vld [vmem:[%s170] sm:$0xff]
        %v205 = vld [vmem:[%s170 + $0x8] sm:$0xff]
        %v206 = vld [vmem:[%s201] sm:$0xff]
        %v207 = vld [vmem:[%s201 + $0x8] sm:$0xff]
        %209 = vset.pattern.permute.xlu0 1
        %210 = vperm.xlu0 %209, %v206
        %v211 = vpop.permute.xlu0 %210
        %214 = vset.pattern.permute.xlu0 1
        %215 = vperm.xlu0 %214, %v207
        %v216 = vpop.permute.xlu0 %215
        %v218 = vadd.f32 %v204, %v211
        %v219 = vadd.f32 %v205, %v216
        %220 = vset.pattern.permute.xlu0 0
        %221 = vperm.xlu0 %220, %v206
        %v222 = vpop.permute.xlu0 %221
        %224 = vset.pattern.permute.xlu0 0
        %225 = vperm.xlu0 %224, %v207
        %v226 = vpop.permute.xlu0 %225
        %v228 = vmul.f32 %v222, %v204
        %v229 = vmul.f32 %v226, %v205
        %v230 = vand.u32 2147483647, %v228
        %vm231 = vcmp.le.f32.partialorder %v230, 0.7853982
        %vm232 = vcmp.lt.s32.totalorder %v228, 0
        %v233 = vand.u32 %v228, 2139095040
        %v234 = vshrl.u32 %v233, 23
        %v235 = vsub.s32 %v234, 127
        %v236 = vand.u32 2147483647, %v228
        %v237 = vand.u32 %v236, 8388607
        %v238 = vor.u32 %v237, 8388608
        %v239 = vsub.s32 0, %v238
        %v240 = vadd.s32 %v235, 1
        %vm241 = vcmp.gt.s32.totalorder %v240, 0
        %v242 = vsel %vm241, %v240, 0
        %v243 = vshrl.u32 %v242, 5
        %v244 = vand.u32 %v242, 31
        %v245 = vsub.s32 32, %v244
        %v246 = vshrl.u32 683565275, %v245
        %v247 = vshll.u32 683565275, %v244
        %v248 = vshrl.u32 2475754826, %v245
        %v249 = vor.u32 %v247, %v248
        %v250 = vshll.u32 2475754826, %v244
        %v251 = vshrl.u32 2131351028, %v245
        %v252 = vor.u32 %v250, %v251
        %v253 = vshll.u32 2131351028, %v244
        %v254 = vshrl.u32 2102212464, %v245
        %v255 = vor.u32 %v253, %v254
        %v256 = vshll.u32 2102212464, %v244
        %v257 = vshrl.u32 920167782, %v245
        %v258 = vor.u32 %v256, %v257
        %v259 = vshll.u32 920167782, %v244
        %v260 = vshrl.u32 1326507024, %v245
        %v261 = vor.u32 %v259, %v260
        %vm262 = vcmp.lt.s32.totalorder %v243, 1
        %vm263 = vcmp.lt.s32.totalorder %v243, 2
        %vm264 = vcmp.lt.s32.totalorder %v243, 3
        %vm265 = vcmp.lt.s32.totalorder %v243, 4
        %v266 = vsel %vm262, %v246, %v249
        %v267 = vsel %vm265, %v255, 2102212464
        %v268 = vsel %vm264, %v252, %v267
        %v269 = vsel %vm263, %v266, %v268
        %v270 = vsel %vm262, %v249, %v252
        %v271 = vsel %vm265, %v258, 920167782
        %v272 = vsel %vm264, %v255, %v271
        %v273 = vsel %vm263, %v270, %v272
        %v274 = vsel %vm262, %v252, %v255
        %v275 = vsel %vm265, %v261, 1326507024
        %v276 = vsel %vm264, %v258, %v275
        %v277 = vsel %vm263, %v274, %v276
        %v278 = vshll.u32 %v238, 8
        %v279 = vmul.u32.u64.compose %v278, %v277
        %v280 = vextract.low.u32 %v279
        %v281 = vextract.high.u32 %v279
        %v282 = vmul.u32.u64.compose %v278, %v273
        %v283 = vextract.low.u32 %v282
        %v284 = vextract.high.u32 %v282
        %v285 = vmul.u32 %v278, %v269
        %v286 = vadd.s32 %v281, %v283
        %vm287 = vc.u32 %v281, %v283
        %v288 = vadd.s32 %v284, 1
        %v289 = vsel %vm287, %v288, %v284
        %v290 = vadd.s32 %v285, %v289
        %v291 = vadd.s32 %v290, 536870912
        %v292 = vshrl.u32 %v291, 30
        %v293 = vshll.u32 %v292, 30
        %v294 = vsub.s32 %v290, %v293
        %vm295 = vcmp.lt.s32.totalorder %v294, 0
        %v296 = vsub.s32 0, %v294
        %v297 = vsel %vm295, %v296, %v294
        %v298 = vclz %v297
        %v299 = vsub.s32 %v298, 2
        %vm300 = vcmp.gt.s32.totalorder 0, %v299
        %v301 = vsel %vm300, 0, %v299
        %v302 = vsub.s32 32, %v301
        %v303 = vshll.u32 %v294, %v301
        %v304 = vshrl.u32 %v286, %v302
        %v305 = vor.u32 %v303, %v304
        %v306 = vsub.s32 4294967266, %v301
        %v307 = vadd.s32 %v306, 127
        %v308 = vshll.u32 %v307, 23
        %v309 = vor.u32 4788187, %v308
        %v310 = vand.u32 2147483647, %v309
        %v312 = vcvt.s32.f32 %v305
        %v313 = vmul.f32 %v312, %v310
        %v314 = vxor.u32 %v313, 2147483648
        %v315 = vsel %vm232, %v314, %v313
        %v316 = vsub.s32 4, %v292
        %v317 = vsel %vm232, %v316, %v292
        %v318 = vsel %vm231, %v228, %v315
        %v319 = vsel %vm231, 0, %v317
        %v320 = vcosq.f32.pop %v318
        %v321 = vsinq.f32.pop %v318
        %vm322 = vweird.f32 %v228
        %v323 = vand.u32 %v319, 3
        %vm324 = vcmp.lt.s32.totalorder %v323, 2
        %vm325 = vcmp.eq.s32.totalorder %v323, 0
        %v326 = vxor.u32 %v321, 2147483648
        %v327 = vsel %vm325, %v320, %v326
        %vm328 = vcmp.eq.s32.totalorder %v323, 2
        %v329 = vxor.u32 %v320, 2147483648
        %v330 = vsel %vm328, %v329, %v321
        %v331 = vsel %vm324, %v327, %v330
        %v332 = vsel %vm322, nan, %v331
        %v333 = vand.u32 2147483647, %v229
        %vm334 = vcmp.le.f32.partialorder %v333, 0.7853982
        %vm335 = vcmp.lt.s32.totalorder %v229, 0
        %v336 = vand.u32 %v229, 2139095040
        %v337 = vshrl.u32 %v336, 23
        %v338 = vsub.s32 %v337, 127
        %v339 = vand.u32 2147483647, %v229
        %v340 = vand.u32 %v339, 8388607
        %v341 = vor.u32 %v340, 8388608
        %v342 = vsub.s32 0, %v341
        %v343 = vadd.s32 %v338, 1
        %vm344 = vcmp.gt.s32.totalorder %v343, 0
        %v345 = vsel %vm344, %v343, 0
        %v346 = vshrl.u32 %v345, 5
        %v347 = vand.u32 %v345, 31
        %v348 = vsub.s32 32, %v347
        %v349 = vshrl.u32 683565275, %v348
        %v350 = vshll.u32 683565275, %v347
        %v351 = vshrl.u32 2475754826, %v348
        %v352 = vor.u32 %v350, %v351
        %v353 = vshll.u32 2475754826, %v347
        %v354 = vshrl.u32 2131351028, %v348
        %v355 = vor.u32 %v353, %v354
        %v356 = vshll.u32 2131351028, %v347
        %v357 = vshrl.u32 2102212464, %v348
        %v358 = vor.u32 %v356, %v357
        %v359 = vshll.u32 2102212464, %v347
        %v360 = vshrl.u32 920167782, %v348
        %v361 = vor.u32 %v359, %v360
        %v362 = vshll.u32 920167782, %v347
        %v363 = vshrl.u32 1326507024, %v348
        %v364 = vor.u32 %v362, %v363
        %vm365 = vcmp.lt.s32.totalorder %v346, 1
        %vm366 = vcmp.lt.s32.totalorder %v346, 2
        %vm367 = vcmp.lt.s32.totalorder %v346, 3
        %vm368 = vcmp.lt.s32.totalorder %v346, 4
        %v369 = vsel %vm365, %v349, %v352
        %v370 = vsel %vm368, %v358, 2102212464
        %v371 = vsel %vm367, %v355, %v370
        %v372 = vsel %vm366, %v369, %v371
        %v373 = vsel %vm365, %v352, %v355
        %v374 = vsel %vm368, %v361, 920167782
        %v375 = vsel %vm367, %v358, %v374
        %v376 = vsel %vm366, %v373, %v375
        %v377 = vsel %vm365, %v355, %v358
        %v378 = vsel %vm368, %v364, 1326507024
        %v379 = vsel %vm367, %v361, %v378
        %v380 = vsel %vm366, %v377, %v379
        %v381 = vshll.u32 %v341, 8
        %v382 = vmul.u32.u64.compose %v381, %v380
        %v383 = vextract.low.u32 %v382
        %v384 = vextract.high.u32 %v382
        %v385 = vmul.u32.u64.compose %v381, %v376
        %v386 = vextract.low.u32 %v385
        %v387 = vextract.high.u32 %v385
        %v388 = vmul.u32 %v381, %v372
        %v389 = vadd.s32 %v384, %v386
        %vm390 = vc.u32 %v384, %v386
        %v391 = vadd.s32 %v387, 1
        %v392 = vsel %vm390, %v391, %v387
        %v393 = vadd.s32 %v388, %v392
        %v394 = vadd.s32 %v393, 536870912
        %v395 = vshrl.u32 %v394, 30
        %v396 = vshll.u32 %v395, 30
        %v397 = vsub.s32 %v393, %v396
        %vm398 = vcmp.lt.s32.totalorder %v397, 0
        %v399 = vsub.s32 0, %v397
        %v400 = vsel %vm398, %v399, %v397
        %v401 = vclz %v400
        %v402 = vsub.s32 %v401, 2
        %vm403 = vcmp.gt.s32.totalorder 0, %v402
        %v404 = vsel %vm403, 0, %v402
        %v405 = vsub.s32 32, %v404
        %v406 = vshll.u32 %v397, %v404
        %v407 = vshrl.u32 %v389, %v405
        %v408 = vor.u32 %v406, %v407
        %v409 = vsub.s32 4294967266, %v404
        %v410 = vadd.s32 %v409, 127
        %v411 = vshll.u32 %v410, 23
        %v412 = vor.u32 4788187, %v411
        %v413 = vand.u32 2147483647, %v412
        %v415 = vcvt.s32.f32 %v408
        %v416 = vmul.f32 %v415, %v413
        %v417 = vxor.u32 %v416, 2147483648
        %v418 = vsel %vm335, %v417, %v416
        %v419 = vsub.s32 4, %v395
        %v420 = vsel %vm335, %v419, %v395
        %v421 = vsel %vm334, %v229, %v418
        %v422 = vsel %vm334, 0, %v420
        %v423 = vcosq.f32.pop %v421
        %v424 = vsinq.f32.pop %v421
        %vm425 = vweird.f32 %v229
        %v426 = vand.u32 %v422, 3
        %vm427 = vcmp.lt.s32.totalorder %v426, 2
        %vm428 = vcmp.eq.s32.totalorder %v426, 0
        %v429 = vxor.u32 %v424, 2147483648
        %v430 = vsel %vm428, %v423, %v429
        %vm431 = vcmp.eq.s32.totalorder %v426, 2
        %v432 = vxor.u32 %v423, 2147483648
        %v433 = vsel %vm431, %v432, %v424
        %v434 = vsel %vm427, %v430, %v433
        %v435 = vsel %vm425, nan, %v434
        %v436 = vmul.f32 %v211, %v332
        %v437 = vmul.f32 %v216, %v435
        %v438 = vsub.f32 %v218, %v436
        %v439 = vsub.f32 %v219, %v437
        %440 = vst [vmem:[%s195] sm:$0xff] %v438
        %441 = vst [vmem:[%s195 + $0x8] sm:$0xff] %v439
        %s442 = sand.u32 %s95, 1
        %s443 = scalar_lea.sflag [#allocation4], %s442
        %s444 = sand.u32 %s95, 1
        %s445 = smul.addr %s444, 16
        %s446 = scalar_lea.vmem [#allocation5], %s445
        // Predicated region
        $region33: #{tpu_custom_call.1} parent=27 // pred_check
          %p447 = pneg %p105
        $region34: #{tpu_custom_call.1} parent=27 // pred_check_branch
          %449 = sbr.rel (%p447) target = $region36
        $region35: #{tpu_custom_call.1} parent=27 // pred_region
          %s450 = smul.u32 2, %s23
          %s452 = ssub.s32 256, 256
          %453 = vsyncadd %s443, %s452
          %s454 = smul.addr %s450, 2
          %s455 = sadd.s32 %s24, %s454
          %s456 = smul.addr %s455, 128
          %s457 = scalar_lea.hbm %s2, %s456
          %s458 = sshll.u32 %s446, 4
          %s459 = int_to_ptr.vmem [resolvable:$true] %s458
          %464 = dma.vmem_to_hbm [thread:$0]  %s459, 256, %s457, %s443, 128, 256, 8
        $region36: #{tpu_custom_call.1} parent=27 // pred_fallthru
          _
      $region28: #{tpu_custom_call.1} parent=5 // pred_fallthru
        _
      %p465 = scmp.le.s32.totalorder 2, %s14
      // Predicated region
      $region37: #{tpu_custom_call.1} parent=5 // pred_check
        %p466 = pneg %p465
      $region38: #{tpu_custom_call.1} parent=5 // pred_check_branch
        %468 = sbr.rel (%p466) target = $region40
      $region39: #{tpu_custom_call.1} parent=5 // pred_region
        %s469 = ssub.s32 %s14, 2
        // Predicated region
        $region41: #{tpu_custom_call.1} parent=39 // pred_check
          %p470 = pneg %p111
        $region42: #{tpu_custom_call.1} parent=39 // pred_check_branch
          %472 = sbr.rel (%p470) target = $region44
        $region43: #{tpu_custom_call.1} parent=39 // pred_region
          %s473 = sand.u32 %s96, 1
          %s474 = scalar_lea.sflag [#allocation4], %s473
          %s475 = sand.u32 %s96, 1
          %s476 = smul.addr %s475, 16
          %s477 = scalar_lea.vmem [#allocation5], %s476
          %478 = dma.done %s474, 256
        $region44: #{tpu_custom_call.1} parent=39 // pred_fallthru
          _
      $region40: #{tpu_custom_call.1} parent=5 // pred_fallthru
        _
    $region6: #{tpu_custom_call.1} parent=1 // loop_footer
      %s18 = sadd.s32 1, %s14
    $region7: #{tpu_custom_call.1} parent=1 // loop_footer_branch
      %13 = sbr.rel target = $region3
    $region8: #{tpu_custom_call.1} parent=1 // loop_exit
      _
    %479 = vsyncpa [#allocation3], 1
    %s480 = scalar_lea.sflag [#allocation3], 1
    %481 = vsyncpa %s480, 1
    %482 = vsyncpa [#allocation4], 1
    %s483 = scalar_lea.sflag [#allocation4], 1
    %484 = vsyncpa %s483, 1

</llo_original>
